<compile_context>
chip_gen: v7x
topology: tpu7x:2x2x1
jax: 0.10.0
libtpu: 0.0.40
codegen_flags: <defaults>
</compile_context>

<pallas_src>
import functools

import jax
import jax.numpy as jnp
from jax.experimental import pallas as pl
from jax.experimental.pallas import tpu as pltpu


# Padded layer widths (original torch sizes in comments).
C2 = 256   # combinator output       (orig 200)
C3 = 128   # head layer-1 output     (orig 100)
C4 = 32    # head layer-2 output     (orig 20)
C5 = 128   # head output / Q-values  (orig 2)
OUT_VALID = 2   # only the first 2 output columns are real action values


def _round_up(x, m):
    return ((x + m - 1) // m) * m


# ----------------------------------------------------------------------------
# Pallas kernel: entire BQN forward (combinator + head) for one batch tile.
# ----------------------------------------------------------------------------
def bqn_kernel(
    emb_ref,         # (TB, 2H)  bf16  concatenated entity-A / entity-B embeddings
    feat_ref,        # (TB, F)   bf16  sorted hand-crafted features
    w1_ref, b1_ref,  # combinator Linear(2H -> H):   w1 (2H, H)  bf16, b1 (1, H)  f32
    w2_ref, b2_ref,  # combinator Linear(H -> 256):  w2 (H, C2)  bf16, b2 (1, C2) f32
    w3f_ref,         # head Linear(F+256 -> 128), feature columns:    (F, C3)  bf16
    w3c_ref,         # head Linear(F+256 -> 128), combinator columns: (C2, C3) bf16
    b3_ref,          # (1, C3) f32
    w4_ref, b4_ref,  # head Linear(128 -> 32): w4 (C3, C4) bf16, b4 (1, C4) f32
    w5_ref, b5_ref,  # head Linear(32 -> 128): w5 (C4, C5) bf16, b5 (1, C5) f32
    out_ref,         # (TB, C5) f32 — [:, :2] = [exploration, exploitation]
):
    bf16 = jnp.bfloat16
    e = emb_ref[...]       # already bf16
    feats = feat_ref[...]  # already bf16

    # --- combinator: Linear -> Tanh -> (Dropout=id) -> Linear -> Tanh -> (Dropout=id)
    # Matmuls run on the MXU in bf16 with f32 accumulation; bias add + tanh in f32.
    h1 = jnp.tanh(
        jnp.dot(e, w1_ref[...], preferred_element_type=jnp.float32) + b1_ref[...]
    )
    comb = jnp.tanh(
        jnp.dot(h1.astype(bf16), w2_ref[...], preferred_element_type=jnp.float32)
        + b2_ref[...]
    )

    # --- head: concat([features, comb]) @ W3ᵀ  ==  features @ W3_f + comb @ W3_c
    z3 = (
        jnp.dot(feats, w3f_ref[...], preferred_element_type=jnp.float32)
        + jnp.dot(comb.astype(bf16), w3c_ref[...], preferred_element_type=jnp.float32)
        + b3_ref[...]
    )
    h3 = jnp.tanh(z3)
    h4 = jnp.tanh(
        jnp.dot(h3.astype(bf16), w4_ref[...], preferred_element_type=jnp.float32)
        + b4_ref[...]
    )
    # Lane-dense (128-wide) output store; only the first 2 columns are meaningful.
    out_ref[...] = (
        jnp.dot(h4.astype(bf16), w5_ref[...], preferred_element_type=jnp.float32)
        + b5_ref[...]
    )


# ----------------------------------------------------------------------------
# Wrapper: batch-tiled grid, resident weights, lane-dense padded output.
# ----------------------------------------------------------------------------
def bqn_forward(embeds, features, params, *, tile_b=256):
    """embeds: (B, 2H) f32/bf16, features: (B, F) f32/bf16, params: padded dict."""
    B = embeds.shape[0]

    # Batch tile: 256 fills the v6e/v7x 256x256 MXU M dimension; for tiny
    # batches fall back to the smallest sublane-aligned tile covering B.
    tb = min(tile_b, _round_up(B, 8))
    Bp = _round_up(B, tb)

    # Stream the big operands in bf16 (halves HBM traffic of the embeds stream).
    embeds = embeds.astype(jnp.bfloat16)
    features = features.astype(jnp.bfloat16)
    if Bp != B:
        embeds = jnp.pad(embeds, ((0, Bp - B), (0, 0)))
        features = jnp.pad(features, ((0, Bp - B), (0, 0)))

    weights = (
        params["w1"], params["b1"],
        params["w2"], params["b2"],
        params["w3f"], params["w3c"], params["b3"],
        params["w4"], params["b4"],
        params["w5"], params["b5"],
    )

    # Batch-tiled specs for the streaming operands, constant-index (resident)
    # specs for all weights/biases (constant index_map => fetched once, not
    # re-DMA'd per grid step).
    def tiled_spec(a):
        return pl.BlockSpec((tb, a.shape[1]), lambda i: (i, 0))

    def const_spec(a):
        nd = a.ndim
        return pl.BlockSpec(a.shape, lambda i, _nd=nd: (0,) * _nd)

    in_specs = [tiled_spec(embeds), tiled_spec(features)] + [const_spec(w) for w in weights]
    out_spec = pl.BlockSpec((tb, C5), lambda i: (i, 0))

    # Advisory cost estimate so XLA schedules this custom call sensibly.
    flops = 2 * Bp * sum(
        int(params[k].shape[0]) * int(params[k].shape[1])
        for k in ("w1", "w2", "w3f", "w3c", "w4", "w5")
    )
    transcendentals = Bp * (params["w1"].shape[1] + C2 + C3 + C4)
    bytes_accessed = (
        embeds.size * embeds.dtype.itemsize
        + features.size * features.dtype.itemsize
        + sum(int(w.size) * w.dtype.itemsize for w in weights)
        + Bp * C5 * 4
    )

    out = pl.pallas_call(
        bqn_kernel,
        out_shape=jax.ShapeDtypeStruct((Bp, C5), jnp.float32),
        grid=(Bp // tb,),
        in_specs=in_specs,
        out_specs=out_spec,
        compiler_params=pltpu.CompilerParams(
            dimension_semantics=("parallel",),        # megacore-shard batch on v7x
            vmem_limit_bytes=48 << 20,                # headroom under v7x's 64 MiB
        ),
        cost_estimate=pl.CostEstimate(
            flops=int(flops),
            transcendentals=int(transcendentals),
            bytes_accessed=int(bytes_accessed),
        ),
    )(embeds, features, *weights)

    # Strip batch padding and the lane padding of the 2-wide action-value head.
    return out[:B, :OUT_VALID]


# ----------------------------------------------------------------------------
# Deterministic parameter construction (synthetic, matches module's shapes)
# ----------------------------------------------------------------------------
def init_raw_params(key, hidden_size, num_feats):
    """Unpadded f32 parameters with the module's true shapes (pre-transposed)."""
    k = num_feats + 200
    ks = jax.random.split(key, 10)

    def lin(kw, kb, n_in, n_out, scale=0.05):
        w = scale * jax.random.normal(kw, (n_in, n_out), jnp.float32)
        b = scale * jax.random.normal(kb, (1, n_out), jnp.float32)
        return w, b

    w1, b1 = lin(ks[0], ks[1], 2 * hidden_size, hidden_size)   # combinator L1
    w2, b2 = lin(ks[2], ks[3], hidden_size, 200)               # combinator L2
    w3, b3 = lin(ks[4], ks[5], k, 100)                         # head L1 (F+200 -> 100)
    w4, b4 = lin(ks[6], ks[7], 100, 20)                        # head L2
    w5, b5 = lin(ks[8], ks[9], 20, 2)                          # head L3

    # Split head-L1 weight into feature / combinator column blocks (folds the
    # torch concat into two matmuls).
    w3f = w3[:num_feats, :]   # (F, 100)
    w3c = w3[num_feats:, :]   # (200, 100)

    return dict(w1=w1, b1=b1, w2=w2, b2=b2,
                w3f=w3f, w3c=w3c, b3=b3,
                w4=w4, b4=b4, w5=w5, b5=b5)


def pad_and_cast_params(raw):
    """Zero-pad to hardware-friendly widths and cast weights to bf16.

    Padding is exact: padded output columns have zero weights + zero bias, so
    the padded activations are tanh(0)=0 and the padded rows of the following
    weight multiply zeros.
    """
    def pad_to(a, rows, cols):
        return jnp.pad(a, ((0, rows - a.shape[0]), (0, cols - a.shape[1])))

    bf16 = jnp.bfloat16
    p = {}
    p["w1"] = raw["w1"].astype(bf16)                                   # (2H, H)
    p["b1"] = raw["b1"]                                                # (1, H)  f32
    p["w2"] = pad_to(raw["w2"], raw["w2"].shape[0], C2).astype(bf16)   # (H, 256)
    p["b2"] = pad_to(raw["b2"], 1, C2)                                 # (1, 256)
    p["w3f"] = pad_to(raw["w3f"], raw["w3f"].shape[0], C3).astype(bf16)  # (F, 128)
    p["w3c"] = pad_to(raw["w3c"], C2, C3).astype(bf16)                 # (256, 128)
    p["b3"] = pad_to(raw["b3"], 1, C3)                                 # (1, 128)
    p["w4"] = pad_to(raw["w4"], C3, C4).astype(bf16)                   # (128, 32)
    p["b4"] = pad_to(raw["b4"], 1, C4)                                 # (1, 32)
    p["w5"] = pad_to(raw["w5"], C4, C5).astype(bf16)                   # (32, 128)
    p["b5"] = pad_to(raw["b5"], 1, C5)                                 # (1, 128)
    return p


# ----------------------------------------------------------------------------
# Pure-JAX references (eval-mode dropout = identity)
# ----------------------------------------------------------------------------
def bqn_reference_f32(embeds, features, p):
    h1 = jnp.tanh(embeds @ p["w1"] + p["b1"])
    comb = jnp.tanh(h1 @ p["w2"] + p["b2"])
    z3 = features @ p["w3f"] + comb @ p["w3c"] + p["b3"]
    h3 = jnp.tanh(z3)
    h4 = jnp.tanh(h3 @ p["w4"] + p["b4"])
    return h4 @ p["w5"] + p["b5"]


def bqn_reference_bf16(embeds, features, p):
    """Same forward with the kernel's exact bf16-matmul / f32-accumulate recipe."""
    bf16 = jnp.bfloat16
    f32 = jnp.float32
    dot = functools.partial(jnp.dot, preferred_element_type=f32)
    e = embeds.astype(bf16)
    f = features.astype(bf16)
    h1 = jnp.tanh(dot(e, p["w1"].astype(bf16)) + p["b1"])
    comb = jnp.tanh(dot(h1.astype(bf16), p["w2"].astype(bf16)) + p["b2"])
    z3 = (dot(f, p["w3f"].astype(bf16))
          + dot(comb.astype(bf16), p["w3c"].astype(bf16)) + p["b3"])
    h3 = jnp.tanh(z3)
    h4 = jnp.tanh(dot(h3.astype(bf16), p["w4"].astype(bf16)) + p["b4"])
    return dot(h4.astype(bf16), p["w5"].astype(bf16)) + p["b5"]


if __name__ == "__main__":
    # Small, module-consistent shapes: BERT hidden size shrunk to 64 for the
    # synthetic test (768 in the real module), 8 hand-crafted features,
    # batch of 8 candidate pairs.
    B = 8            # number of candidate pairs in the batch
    H = 64           # synthetic "BERT" hidden size (768 in the real module)
    F = 8            # num_feats

    key = jax.random.PRNGKey(0)
    k_emb, k_feat, k_par = jax.random.split(key, 3)

    embeds = jax.random.normal(k_emb, (B, 2 * H), jnp.float32)    # cat([ea, eb])
    features = jax.random.normal(k_feat, (B, F), jnp.float32)     # sorted features

    raw_params = init_raw_params(k_par, H, F)
    params = pad_and_cast_params(raw_params)

    out = bqn_forward(embeds, features, params)
    out = jax.block_until_ready(out)
    assert out.shape == (B, OUT_VALID)

    # Tight check against a reference using the identical bf16-matmul recipe.
    ref_bf16 = bqn_reference_bf16(embeds, features, raw_params)
    assert jnp.allclose(out, ref_bf16, atol=1e-3, rtol=1e-2), (
        jnp.max(jnp.abs(out - ref_bf16)))

    # Loose sanity check against the full-f32 reference (bf16 matmul error).
    ref_f32 = bqn_reference_f32(embeds, features, raw_params)
    assert jnp.allclose(out, ref_f32, atol=5e-2, rtol=5e-2), (
        jnp.max(jnp.abs(out - ref_f32)))

    print("KERNEL_OK")
</pallas_src>

<mosaic_0001>
module attributes {stable_mosaic.version = 11 : i64} {
  func.func @bqn_kernel(%arg0: i32, %arg1: memref<8x128xbf16, #tpu.memory_space<vmem>>, %arg2: memref<8x8xbf16, #tpu.memory_space<vmem>>, %arg3: memref<128x64xbf16, #tpu.memory_space<vmem>>, %arg4: memref<1x64xf32, #tpu.memory_space<vmem>>, %arg5: memref<64x256xbf16, #tpu.memory_space<vmem>>, %arg6: memref<1x256xf32, #tpu.memory_space<vmem>>, %arg7: memref<8x128xbf16, #tpu.memory_space<vmem>>, %arg8: memref<256x128xbf16, #tpu.memory_space<vmem>>, %arg9: memref<1x128xf32, #tpu.memory_space<vmem>>, %arg10: memref<128x32xbf16, #tpu.memory_space<vmem>>, %arg11: memref<1x32xf32, #tpu.memory_space<vmem>>, %arg12: memref<32x128xbf16, #tpu.memory_space<vmem>>, %arg13: memref<1x128xf32, #tpu.memory_space<vmem>>, %arg14: memref<8x128xf32, #tpu.memory_space<vmem>>) attributes {dimension_semantics = [#tpu.dimension_semantics<parallel>], iteration_bounds = array<i64: 1>, scalar_prefetch = 0 : i64, scratch_operands = 0 : i64, tpu.core_type = #tpu.core_type<tc>, window_params = [{transform_indices = @transform_0, window_bounds = array<i64: 8, 128>}, {transform_indices = @transform_1, window_bounds = array<i64: 8, 8>}, {pipeline_mode = #tpu.pipeline_mode<synchronous>, transform_indices = @transform_2, window_bounds = array<i64: 128, 64>}, {pipeline_mode = #tpu.pipeline_mode<synchronous>, transform_indices = @transform_3, window_bounds = array<i64: 1, 64>}, {pipeline_mode = #tpu.pipeline_mode<synchronous>, transform_indices = @transform_4, window_bounds = array<i64: 64, 256>}, {pipeline_mode = #tpu.pipeline_mode<synchronous>, transform_indices = @transform_5, window_bounds = array<i64: 1, 256>}, {pipeline_mode = #tpu.pipeline_mode<synchronous>, transform_indices = @transform_6, window_bounds = array<i64: 8, 128>}, {pipeline_mode = #tpu.pipeline_mode<synchronous>, transform_indices = @transform_7, window_bounds = array<i64: 256, 128>}, {pipeline_mode = #tpu.pipeline_mode<synchronous>, transform_indices = @transform_8, window_bounds = array<i64: 1, 128>}, {pipeline_mode = #tpu.pipeline_mode<synchronous>, transform_indices = @transform_9, window_bounds = array<i64: 128, 32>}, {pipeline_mode = #tpu.pipeline_mode<synchronous>, transform_indices = @transform_10, window_bounds = array<i64: 1, 32>}, {pipeline_mode = #tpu.pipeline_mode<synchronous>, transform_indices = @transform_11, window_bounds = array<i64: 32, 128>}, {pipeline_mode = #tpu.pipeline_mode<synchronous>, transform_indices = @transform_12, window_bounds = array<i64: 1, 128>}, {transform_indices = @transform_13, window_bounds = array<i64: 8, 128>}]} {
    %c0 = arith.constant 0 : index
    %c0_0 = arith.constant 0 : index
    %0 = vector.load %arg1[%c0, %c0_0] : memref<8x128xbf16, #tpu.memory_space<vmem>>, vector<8x128xbf16>
    %c0_1 = arith.constant 0 : index
    %c0_2 = arith.constant 0 : index
    %1 = vector.load %arg2[%c0_1, %c0_2] : memref<8x8xbf16, #tpu.memory_space<vmem>>, vector<8x8xbf16>
    %c0_3 = arith.constant 0 : index
    %c0_4 = arith.constant 0 : index
    %2 = vector.load %arg3[%c0_3, %c0_4] : memref<128x64xbf16, #tpu.memory_space<vmem>>, vector<128x64xbf16>
    %cst = arith.constant dense<0.000000e+00> : vector<8x64xf32>
    %3 = tpu.matmul %0, %2, %cst {dimension_numbers = #tpu.dot_dimension_numbers<[1], [0], [0], [1], [0, 0, 1, 1], [], []>} : vector<8x128xbf16>, vector<128x64xbf16>, vector<8x64xf32> -> vector<8x64xf32>
    %c0_5 = arith.constant 0 : index
    %c0_6 = arith.constant 0 : index
    %4 = vector.load %arg4[%c0_5, %c0_6] : memref<1x64xf32, #tpu.memory_space<vmem>>, vector<1x64xf32>
    %5 = vector.broadcast %4 : vector<1x64xf32> to vector<8x64xf32>
    %6 = arith.addf %3, %5 : vector<8x64xf32>
    %7 = math.tanh %6 : vector<8x64xf32>
    %8 = arith.truncf %7 : vector<8x64xf32> to vector<8x64xbf16>
    %c0_7 = arith.constant 0 : index
    %c0_8 = arith.constant 0 : index
    %9 = vector.load %arg5[%c0_7, %c0_8] : memref<64x256xbf16, #tpu.memory_space<vmem>>, vector<64x256xbf16>
    %cst_9 = arith.constant dense<0.000000e+00> : vector<8x256xf32>
    %10 = tpu.matmul %8, %9, %cst_9 {dimension_numbers = #tpu.dot_dimension_numbers<[1], [0], [0], [1], [0, 0, 1, 1], [], []>} : vector<8x64xbf16>, vector<64x256xbf16>, vector<8x256xf32> -> vector<8x256xf32>
    %c0_10 = arith.constant 0 : index
    %c0_11 = arith.constant 0 : index
    %11 = vector.load %arg6[%c0_10, %c0_11] : memref<1x256xf32, #tpu.memory_space<vmem>>, vector<1x256xf32>
    %12 = vector.broadcast %11 : vector<1x256xf32> to vector<8x256xf32>
    %13 = arith.addf %10, %12 : vector<8x256xf32>
    %14 = math.tanh %13 : vector<8x256xf32>
    %c0_12 = arith.constant 0 : index
    %c0_13 = arith.constant 0 : index
    %15 = vector.load %arg7[%c0_12, %c0_13] : memref<8x128xbf16, #tpu.memory_space<vmem>>, vector<8x128xbf16>
    %cst_14 = arith.constant dense<0.000000e+00> : vector<8x128xf32>
    %16 = tpu.matmul %1, %15, %cst_14 {dimension_numbers = #tpu.dot_dimension_numbers<[1], [0], [0], [1], [0, 0, 1, 1], [], []>} : vector<8x8xbf16>, vector<8x128xbf16>, vector<8x128xf32> -> vector<8x128xf32>
    %17 = arith.truncf %14 : vector<8x256xf32> to vector<8x256xbf16>
    %c0_15 = arith.constant 0 : index
    %c0_16 = arith.constant 0 : index
    %18 = vector.load %arg8[%c0_15, %c0_16] : memref<256x128xbf16, #tpu.memory_space<vmem>>, vector<256x128xbf16>
    %cst_17 = arith.constant dense<0.000000e+00> : vector<8x128xf32>
    %19 = tpu.matmul %17, %18, %cst_17 {dimension_numbers = #tpu.dot_dimension_numbers<[1], [0], [0], [1], [0, 0, 1, 1], [], []>} : vector<8x256xbf16>, vector<256x128xbf16>, vector<8x128xf32> -> vector<8x128xf32>
    %20 = arith.addf %16, %19 : vector<8x128xf32>
    %c0_18 = arith.constant 0 : index
    %c0_19 = arith.constant 0 : index
    %21 = vector.load %arg9[%c0_18, %c0_19] : memref<1x128xf32, #tpu.memory_space<vmem>>, vector<1x128xf32>
    %22 = vector.broadcast %21 : vector<1x128xf32> to vector<8x128xf32>
    %23 = arith.addf %20, %22 : vector<8x128xf32>
    %24 = math.tanh %23 : vector<8x128xf32>
    %25 = arith.truncf %24 : vector<8x128xf32> to vector<8x128xbf16>
    %c0_20 = arith.constant 0 : index
    %c0_21 = arith.constant 0 : index
    %26 = vector.load %arg10[%c0_20, %c0_21] : memref<128x32xbf16, #tpu.memory_space<vmem>>, vector<128x32xbf16>
    %cst_22 = arith.constant dense<0.000000e+00> : vector<8x32xf32>
    %27 = tpu.matmul %25, %26, %cst_22 {dimension_numbers = #tpu.dot_dimension_numbers<[1], [0], [0], [1], [0, 0, 1, 1], [], []>} : vector<8x128xbf16>, vector<128x32xbf16>, vector<8x32xf32> -> vector<8x32xf32>
    %c0_23 = arith.constant 0 : index
    %c0_24 = arith.constant 0 : index
    %28 = vector.load %arg11[%c0_23, %c0_24] : memref<1x32xf32, #tpu.memory_space<vmem>>, vector<1x32xf32>
    %29 = vector.broadcast %28 : vector<1x32xf32> to vector<8x32xf32>
    %30 = arith.addf %27, %29 : vector<8x32xf32>
    %31 = math.tanh %30 : vector<8x32xf32>
    %32 = arith.truncf %31 : vector<8x32xf32> to vector<8x32xbf16>
    %c0_25 = arith.constant 0 : index
    %c0_26 = arith.constant 0 : index
    %33 = vector.load %arg12[%c0_25, %c0_26] : memref<32x128xbf16, #tpu.memory_space<vmem>>, vector<32x128xbf16>
    %cst_27 = arith.constant dense<0.000000e+00> : vector<8x128xf32>
    %34 = tpu.matmul %32, %33, %cst_27 {dimension_numbers = #tpu.dot_dimension_numbers<[1], [0], [0], [1], [0, 0, 1, 1], [], []>} : vector<8x32xbf16>, vector<32x128xbf16>, vector<8x128xf32> -> vector<8x128xf32>
    %c0_28 = arith.constant 0 : index
    %c0_29 = arith.constant 0 : index
    %35 = vector.load %arg13[%c0_28, %c0_29] : memref<1x128xf32, #tpu.memory_space<vmem>>, vector<1x128xf32>
    %36 = vector.broadcast %35 : vector<1x128xf32> to vector<8x128xf32>
    %37 = arith.addf %34, %36 : vector<8x128xf32>
    %c0_30 = arith.constant 0 : index
    %c0_31 = arith.constant 0 : index
    %38 = vector.load %arg14[%c0_30, %c0_31] : memref<8x128xf32, #tpu.memory_space<vmem>>, vector<8x128xf32>
    tpu.vector_store %arg14[%c0_30, %c0_31], %37 {strides = array<i32>} : memref<8x128xf32, #tpu.memory_space<vmem>>, vector<8x128xf32>,
    return
  }
  func.func @transform_0(%arg0: i32) -> (i32, i32) {
    %c0_i32 = arith.constant 0 : i32
    %c0_i32_0 = arith.constant 0 : i32
    return %arg0, %c0_i32 : i32, i32
  }
  func.func @transform_1(%arg0: i32) -> (i32, i32) {
    %c0_i32 = arith.constant 0 : i32
    %c0_i32_0 = arith.constant 0 : i32
    return %arg0, %c0_i32 : i32, i32
  }
  func.func @transform_2(%arg0: i32) -> (i32, i32) {
    %c0_i32 = arith.constant 0 : i32
    %c0_i32_0 = arith.constant 0 : i32
    %c0_i32_1 = arith.constant 0 : i32
    return %c0_i32, %c0_i32_0 : i32, i32
  }
  func.func @transform_3(%arg0: i32) -> (i32, i32) {
    %c0_i32 = arith.constant 0 : i32
    %c0_i32_0 = arith.constant 0 : i32
    %c0_i32_1 = arith.constant 0 : i32
    return %c0_i32, %c0_i32_0 : i32, i32
  }
  func.func @transform_4(%arg0: i32) -> (i32, i32) {
    %c0_i32 = arith.constant 0 : i32
    %c0_i32_0 = arith.constant 0 : i32
    %c0_i32_1 = arith.constant 0 : i32
    return %c0_i32, %c0_i32_0 : i32, i32
  }
  func.func @transform_5(%arg0: i32) -> (i32, i32) {
    %c0_i32 = arith.constant 0 : i32
    %c0_i32_0 = arith.constant 0 : i32
    %c0_i32_1 = arith.constant 0 : i32
    return %c0_i32, %c0_i32_0 : i32, i32
  }
  func.func @transform_6(%arg0: i32) -> (i32, i32) {
    %c0_i32 = arith.constant 0 : i32
    %c0_i32_0 = arith.constant 0 : i32
    %c0_i32_1 = arith.constant 0 : i32
    return %c0_i32, %c0_i32_0 : i32, i32
  }
  func.func @transform_7(%arg0: i32) -> (i32, i32) {
    %c0_i32 = arith.constant 0 : i32
    %c0_i32_0 = arith.constant 0 : i32
    %c0_i32_1 = arith.constant 0 : i32
    return %c0_i32, %c0_i32_0 : i32, i32
  }
  func.func @transform_8(%arg0: i32) -> (i32, i32) {
    %c0_i32 = arith.constant 0 : i32
    %c0_i32_0 = arith.constant 0 : i32
    %c0_i32_1 = arith.constant 0 : i32
    return %c0_i32, %c0_i32_0 : i32, i32
  }
  func.func @transform_9(%arg0: i32) -> (i32, i32) {
    %c0_i32 = arith.constant 0 : i32
    %c0_i32_0 = arith.constant 0 : i32
    %c0_i32_1 = arith.constant 0 : i32
    return %c0_i32, %c0_i32_0 : i32, i32
  }
  func.func @transform_10(%arg0: i32) -> (i32, i32) {
    %c0_i32 = arith.constant 0 : i32
    %c0_i32_0 = arith.constant 0 : i32
    %c0_i32_1 = arith.constant 0 : i32
    return %c0_i32, %c0_i32_0 : i32, i32
  }
  func.func @transform_11(%arg0: i32) -> (i32, i32) {
    %c0_i32 = arith.constant 0 : i32
    %c0_i32_0 = arith.constant 0 : i32
    %c0_i32_1 = arith.constant 0 : i32
    return %c0_i32, %c0_i32_0 : i32, i32
  }
  func.func @transform_12(%arg0: i32) -> (i32, i32) {
    %c0_i32 = arith.constant 0 : i32
    %c0_i32_0 = arith.constant 0 : i32
    %c0_i32_1 = arith.constant 0 : i32
    return %c0_i32, %c0_i32_0 : i32, i32
  }
  func.func @transform_13(%arg0: i32) -> (i32, i32) {
    %c0_i32 = arith.constant 0 : i32
    %c0_i32_0 = arith.constant 0 : i32
    return %arg0, %c0_i32 : i32, i32
  }
}

</mosaic_0001>

<llo_original>
// kernel: tpu_custom_call.1
$region0: #{tpu_custom_call.1}
  #allocation0 [shape = 'u32[]', space=smem, size = 0x4, offset = 0x4, fixed_abs, tag = 'smem constant byte address 0x4 - core index']
  #allocation1 [shape = 'u32[144,128]{1,0:T(1,128)}', space=vmem, size = 0x12000, scoped, tag = 'internal scratch']
  %s0 = inlined_call_operand.hbm [shape: bf16[8,128], index: 0, kind: input, shape index: {}]
  %s1 = inlined_call_operand.hbm [shape: bf16[8,8], index: 1, kind: input, shape index: {}]
  %s2 = inlined_call_operand.vmem [shape: bf16[128,64], index: 2, kind: input, shape index: {}]
  %s3 = inlined_call_operand.hbm [shape: f32[1,64], index: 3, kind: input, shape index: {}]
  %s4 = inlined_call_operand.vmem [shape: bf16[64,256], index: 4, kind: input, shape index: {}]
  %s5 = inlined_call_operand.vmem [shape: f32[1,256], index: 5, kind: input, shape index: {}]
  %s6 = inlined_call_operand.hbm [shape: bf16[8,128], index: 6, kind: input, shape index: {}]
  %s7 = inlined_call_operand.vmem [shape: bf16[256,128], index: 7, kind: input, shape index: {}]
  %s8 = inlined_call_operand.hbm [shape: f32[1,128], index: 8, kind: input, shape index: {}]
  %s9 = inlined_call_operand.vmem [shape: bf16[128,32], index: 9, kind: input, shape index: {}]
  %s10 = inlined_call_operand.vmem [shape: f32[1,32], index: 10, kind: input, shape index: {}]
  %s11 = inlined_call_operand.hbm [shape: bf16[32,128], index: 11, kind: input, shape index: {}]
  %s12 = inlined_call_operand.vmem [shape: f32[1,128], index: 12, kind: input, shape index: {}]
  %s13 = inlined_call_operand.hbm [shape: f32[8,128], index: 13, kind: output, shape index: {}]
  %s14 = sld [smem:[#allocation0]]
  $region86: #{tpu_custom_call.1} parent=0
    _
  %s16 = ssub.s32 1, %s14
  %s17 = scalar_select 0, %s16, %s14
  $region1: #{tpu_custom_call.1} parent=0
    #allocation2 [shape = 'u8[2048]{0}', space=vmem, size = 0x800, scoped, tag = 'input window, operand 0, single buffered']
    #allocation3 [shape = 's32[1]{0}', space=sflag, size = 0x4, scoped, tag = 'scoped memory for tpu_custom_call.1']
    #allocation4 [shape = 's32[1]{0}', space=sflag, size = 0x4, scoped, tag = 'scoped memory for tpu_custom_call.1']
    #allocation5 [shape = 'u8[2048]{0}', space=vmem, size = 0x800, scoped, tag = 'input window, operand 1, single buffered']
    #allocation6 [shape = 's32[1]{0}', space=sflag, size = 0x4, scoped, tag = 'scoped memory for tpu_custom_call.1']
    #allocation7 [shape = 'u8[512]{0}', space=vmem, size = 0x400, scoped, tag = 'input window, operand 3, single buffered']
    #allocation8 [shape = 'u8[2048]{0}', space=vmem, size = 0x800, scoped, tag = 'input window, operand 6, single buffered']
    #allocation9 [shape = 's32[1]{0}', space=sflag, size = 0x4, scoped, tag = 'scoped memory for tpu_custom_call.1']
    #allocation10 [shape = 'u8[512]{0}', space=vmem, size = 0x400, scoped, tag = 'input window, operand 8, single buffered']
    #allocation11 [shape = 'u8[8192]{0}', space=vmem, size = 0x2000, scoped, tag = 'input window, operand 11, single buffered']
    #allocation12 [shape = 's32[1]{0}', space=sflag, size = 0x4, scoped, tag = 'scoped memory for tpu_custom_call.1']
    #allocation13 [shape = 'u8[4096]{0}', space=vmem, size = 0x1000, scoped, tag = 'output window, operand 0, single buffered']
    %18 = vsyncpa [#allocation3], 0
    %19 = vsyncpa [#allocation6], 0
    %20 = vsyncpa [#allocation9], 0
    %21 = vsyncpa [#allocation12], 0
    %22 = vsyncpa [#allocation4], 0
    // Predicated region
    $region2: #{tpu_custom_call.1} parent=1 // pred_check
      _
    $region3: #{tpu_custom_call.1} parent=1 // pred_check_branch
      %24 = sbr.rel (0) target = $region5
    $region4: #{tpu_custom_call.1} parent=1 // pred_region
      %s26 = ssub.s32 64, 64
      %27 = vsyncadd [#allocation3], %s26
      %s29 = sshll.u32 [#allocation2], 4
      %s30 = int_to_ptr.vmem [resolvable:$true] %s29
      %32 = dma.hbm_to_vmem [thread:$0]  %s0, 64, %s30, [#allocation3]
    $region5: #{tpu_custom_call.1} parent=1 // pred_fallthru
      _
    // Predicated region
    $region6: #{tpu_custom_call.1} parent=1 // pred_check
      _
    $region7: #{tpu_custom_call.1} parent=1 // pred_check_branch
      %34 = sbr.rel (0) target = $region9
    $region8: #{tpu_custom_call.1} parent=1 // pred_region
      %s36 = ssub.s32 64, 64
      %37 = vsyncadd [#allocation6], %s36
      %s39 = sshll.u32 [#allocation5], 4
      %s40 = int_to_ptr.vmem [resolvable:$true] %s39
      %42 = dma.hbm_to_vmem [thread:$0]  %s1, 64, %s40, [#allocation6]
    $region9: #{tpu_custom_call.1} parent=1 // pred_fallthru
      _
    // Predicated region
    $region10: #{tpu_custom_call.1} parent=1 // pred_check
      _
    $region11: #{tpu_custom_call.1} parent=1 // pred_check_branch
      %44 = sbr.rel (0) target = $region13
    $region12: #{tpu_custom_call.1} parent=1 // pred_region
      _
    $region13: #{tpu_custom_call.1} parent=1 // pred_fallthru
      _
    // Predicated region
    $region14: #{tpu_custom_call.1} parent=1 // pred_check
      _
    $region15: #{tpu_custom_call.1} parent=1 // pred_check_branch
      %46 = sbr.rel (0) target = $region17
    $region16: #{tpu_custom_call.1} parent=1 // pred_region
      %s48 = ssub.s32 16, 16
      %49 = vsyncadd [#allocation6], %s48
      %s51 = sshll.u32 [#allocation7], 4
      %s52 = int_to_ptr.vmem [resolvable:$true] %s51
      %54 = dma.hbm_to_vmem [thread:$0]  %s3, 16, %s52, [#allocation6]
    $region17: #{tpu_custom_call.1} parent=1 // pred_fallthru
      _
    // Predicated region
    $region18: #{tpu_custom_call.1} parent=1 // pred_check
      _
    $region19: #{tpu_custom_call.1} parent=1 // pred_check_branch
      %56 = sbr.rel (0) target = $region21
    $region20: #{tpu_custom_call.1} parent=1 // pred_region
      _
    $region21: #{tpu_custom_call.1} parent=1 // pred_fallthru
      _
    // Predicated region
    $region22: #{tpu_custom_call.1} parent=1 // pred_check
      _
    $region23: #{tpu_custom_call.1} parent=1 // pred_check_branch
      %58 = sbr.rel (0) target = $region25
    $region24: #{tpu_custom_call.1} parent=1 // pred_region
      _
    $region25: #{tpu_custom_call.1} parent=1 // pred_fallthru
      _
    // Predicated region
    $region26: #{tpu_custom_call.1} parent=1 // pred_check
      _
    $region27: #{tpu_custom_call.1} parent=1 // pred_check_branch
      %60 = sbr.rel (0) target = $region29
    $region28: #{tpu_custom_call.1} parent=1 // pred_region
      %s62 = ssub.s32 64, 64
      %63 = vsyncadd [#allocation9], %s62
      %s65 = sshll.u32 [#allocation8], 4
      %s66 = int_to_ptr.vmem [resolvable:$true] %s65
      %68 = dma.hbm_to_vmem [thread:$0]  %s6, 64, %s66, [#allocation9]
    $region29: #{tpu_custom_call.1} parent=1 // pred_fallthru
      _
    // Predicated region
    $region30: #{tpu_custom_call.1} parent=1 // pred_check
      _
    $region31: #{tpu_custom_call.1} parent=1 // pred_check_branch
      %70 = sbr.rel (0) target = $region33
    $region32: #{tpu_custom_call.1} parent=1 // pred_region
      _
    $region33: #{tpu_custom_call.1} parent=1 // pred_fallthru
      _
    // Predicated region
    $region34: #{tpu_custom_call.1} parent=1 // pred_check
      _
    $region35: #{tpu_custom_call.1} parent=1 // pred_check_branch
      %72 = sbr.rel (0) target = $region37
    $region36: #{tpu_custom_call.1} parent=1 // pred_region
      %s74 = ssub.s32 16, 16
      %75 = vsyncadd [#allocation9], %s74
      %s77 = sshll.u32 [#allocation10], 4
      %s78 = int_to_ptr.vmem [resolvable:$true] %s77
      %80 = dma.hbm_to_vmem [thread:$0]  %s8, 16, %s78, [#allocation9]
    $region37: #{tpu_custom_call.1} parent=1 // pred_fallthru
      _
    // Predicated region
    $region38: #{tpu_custom_call.1} parent=1 // pred_check
      _
    $region39: #{tpu_custom_call.1} parent=1 // pred_check_branch
      %82 = sbr.rel (0) target = $region41
    $region40: #{tpu_custom_call.1} parent=1 // pred_region
      _
    $region41: #{tpu_custom_call.1} parent=1 // pred_fallthru
      _
    // Predicated region
    $region42: #{tpu_custom_call.1} parent=1 // pred_check
      _
    $region43: #{tpu_custom_call.1} parent=1 // pred_check_branch
      %84 = sbr.rel (0) target = $region45
    $region44: #{tpu_custom_call.1} parent=1 // pred_region
      _
    $region45: #{tpu_custom_call.1} parent=1 // pred_fallthru
      _
    // Predicated region
    $region46: #{tpu_custom_call.1} parent=1 // pred_check
      _
    $region47: #{tpu_custom_call.1} parent=1 // pred_check_branch
      %86 = sbr.rel (0) target = $region49
    $region48: #{tpu_custom_call.1} parent=1 // pred_region
      %s88 = ssub.s32 256, 256
      %89 = vsyncadd [#allocation12], %s88
      %s90 = sshll.u32 [#allocation11], 4
      %s91 = int_to_ptr.vmem [resolvable:$true] %s90
      %96 = dma.hbm_to_vmem [thread:$0]  %s11, 256, %s91, [#allocation12], 64, 64, 4
    $region49: #{tpu_custom_call.1} parent=1 // pred_fallthru
      _
    // Predicated region
    $region50: #{tpu_custom_call.1} parent=1 // pred_check
      _
    $region51: #{tpu_custom_call.1} parent=1 // pred_check_branch
      %98 = sbr.rel (0) target = $region53
    $region52: #{tpu_custom_call.1} parent=1 // pred_region
      _
    $region53: #{tpu_custom_call.1} parent=1 // pred_fallthru
      _
    // Predicated region
    $region54: #{tpu_custom_call.1} parent=1 // pred_check
      _
    $region55: #{tpu_custom_call.1} parent=1 // pred_check_branch
      %100 = sbr.rel (0) target = $region57
    $region56: #{tpu_custom_call.1} parent=1 // pred_region
      %101 = dma.done [#allocation3], 64
    $region57: #{tpu_custom_call.1} parent=1 // pred_fallthru
      _
    // Predicated region
    $region58: #{tpu_custom_call.1} parent=1 // pred_check
      _
    $region59: #{tpu_custom_call.1} parent=1 // pred_check_branch
      %103 = sbr.rel (0) target = $region61
    $region60: #{tpu_custom_call.1} parent=1 // pred_region
      %104 = dma.done [#allocation6], 64
    $region61: #{tpu_custom_call.1} parent=1 // pred_fallthru
      _
    // Predicated region
    $region62: #{tpu_custom_call.1} parent=1 // pred_check
      _
    $region63: #{tpu_custom_call.1} parent=1 // pred_check_branch
      %106 = sbr.rel (0) target = $region65
    $region64: #{tpu_custom_call.1} parent=1 // pred_region
      %107 = dma.done [#allocation6], 16
    $region65: #{tpu_custom_call.1} parent=1 // pred_fallthru
      _
    // Predicated region
    $region66: #{tpu_custom_call.1} parent=1 // pred_check
      _
    $region67: #{tpu_custom_call.1} parent=1 // pred_check_branch
      %109 = sbr.rel (0) target = $region69
    $region68: #{tpu_custom_call.1} parent=1 // pred_region
      %110 = dma.done [#allocation9], 64
    $region69: #{tpu_custom_call.1} parent=1 // pred_fallthru
      _
    // Predicated region
    $region70: #{tpu_custom_call.1} parent=1 // pred_check
      _
    $region71: #{tpu_custom_call.1} parent=1 // pred_check_branch
      %112 = sbr.rel (0) target = $region73
    $region72: #{tpu_custom_call.1} parent=1 // pred_region
      %113 = dma.done [#allocation9], 16
    $region73: #{tpu_custom_call.1} parent=1 // pred_fallthru
      _
    // Predicated region
    $region74: #{tpu_custom_call.1} parent=1 // pred_check
      _
    $region75: #{tpu_custom_call.1} parent=1 // pred_check_branch
      %115 = sbr.rel (0) target = $region77
    $region76: #{tpu_custom_call.1} parent=1 // pred_region
      %116 = dma.done [#allocation12], 256
    $region77: #{tpu_custom_call.1} parent=1 // pred_fallthru
      _
    %v118 = vld [vmem:[#allocation2] sm:$0xf]
    %v119 = vld [vmem:[#allocation5] sm:$0xf]
    %v120 = vld [vmem:[%s2] sm:$0xf]
    %v121 = vld [vmem:[%s2 + $0x4] sm:$0xf]
    %v122 = vld [vmem:[%s2 + $0x8] sm:$0xf]
    %v123 = vld [vmem:[%s2 + $0xc] sm:$0xf]
    %v124 = vld [vmem:[%s2 + $0x10] sm:$0xf]
    %v125 = vld [vmem:[%s2 + $0x14] sm:$0xf]
    %v126 = vld [vmem:[%s2 + $0x18] sm:$0xf]
    %v127 = vld [vmem:[%s2 + $0x1c] sm:$0xf]
    %v128 = vld [vmem:[%s2 + $0x20] sm:$0xf]
    %v129 = vld [vmem:[%s2 + $0x24] sm:$0xf]
    %v130 = vld [vmem:[%s2 + $0x28] sm:$0xf]
    %v131 = vld [vmem:[%s2 + $0x2c] sm:$0xf]
    %v132 = vld [vmem:[%s2 + $0x30] sm:$0xf]
    %v133 = vld [vmem:[%s2 + $0x34] sm:$0xf]
    %v134 = vld [vmem:[%s2 + $0x38] sm:$0xf]
    %v135 = vld [vmem:[%s2 + $0x3c] sm:$0xf]
    %v136 = vld [vmem:[#allocation7] sm:$0x1]
    %v138 = vlaneseq
    %v139 = vshrl.u32 %v138, 7
    %v140 = vsub.s32 0, %v139
    %v141 = vrot.slane %v136, %v140
    %v159 = vunpack.c.l.b16 %v120
    %v160 = vunpack.c.l.b16 %v121
    %v161 = vunpack.c.l.b16 %v122
    %v162 = vunpack.c.l.b16 %v123
    %v163 = vunpack.c.l.b16 %v124
    %v164 = vunpack.c.l.b16 %v125
    %v165 = vunpack.c.l.b16 %v126
    %v166 = vunpack.c.l.b16 %v127
    %v167 = vunpack.c.l.b16 %v128
    %v168 = vunpack.c.l.b16 %v129
    %v169 = vunpack.c.l.b16 %v130
    %v170 = vunpack.c.l.b16 %v131
    %v171 = vunpack.c.l.b16 %v132
    %v172 = vunpack.c.l.b16 %v133
    %v173 = vunpack.c.l.b16 %v134
    %v174 = vunpack.c.l.b16 %v135
    %v175 = vpack.c.b16 %v160, %v159
    %v176 = vpack.c.b16 %v162, %v161
    %v177 = vpack.c.b16 %v164, %v163
    %v178 = vpack.c.b16 %v166, %v165
    %v179 = vpack.c.b16 %v168, %v167
    %v180 = vpack.c.b16 %v170, %v169
    %v181 = vpack.c.b16 %v172, %v171
    %v182 = vpack.c.b16 %v174, %v173
    %191 = vmatprep.subr.bf16.mxu0 0
    %192 = vmatpush1.bf16.msra.mxu0 %v175
    %193 = vmatprep.subr.bf16.mxu0 0
    %194 = vmatpush1.bf16.msra.mxu0 %v176
    %195 = vmatprep.subr.bf16.mxu0 0
    %196 = vmatpush1.bf16.msra.mxu0 %v177
    %197 = vmatprep.subr.bf16.mxu0 0
    %198 = vmatpush1.bf16.msra.mxu0 %v178
    %199 = vmatprep.subr.bf16.mxu0 0
    %200 = vmatpush1.bf16.msra.mxu0 %v179
    %201 = vmatprep.subr.bf16.mxu0 0
    %202 = vmatpush1.bf16.msra.mxu0 %v180
    %203 = vmatprep.subr.bf16.mxu0 0
    %204 = vmatpush1.bf16.msra.mxu0 %v181
    %205 = vmatprep.subr.bf16.mxu0 0
    %206 = vmatpush1.bf16.msra.mxu0 %v182
    %207 = vmatprep.subr.bf16.mxu0 0
    %208 = vmatpush1.bf16.msra.mxu0 0
    %209 = vmatprep.subr.bf16.mxu0 0
    %210 = vmatpush1.bf16.msra.mxu0 0
    %211 = vmatprep.subr.bf16.mxu0 0
    %212 = vmatpush1.bf16.msra.mxu0 0
    %213 = vmatprep.subr.bf16.mxu0 0
    %214 = vmatpush1.bf16.msra.mxu0 0
    %215 = vmatprep.subr.bf16.mxu0 0
    %216 = vmatpush1.bf16.msra.mxu0 0
    %217 = vmatprep.subr.bf16.mxu0 0
    %218 = vmatpush1.bf16.msra.mxu0 0
    %219 = vmatprep.subr.bf16.mxu0 0
    %220 = vmatpush1.bf16.msra.mxu0 0
    %221 = vmatprep.subr.bf16.mxu0 0
    %222 = vmatpush1.bf16.msra.mxu0 0
    %223 = vmatprep.mubr.bf16.mxu0 0
    %224 = vmatmul.mubr.bf16.gmra.mrb[0].mxu0 %v118
    %v225 = vpop.f32.mrb[0].mxu0
    %v226 = vadd.f32 %v141, %v225
    %v227 = vpop.f32.mrb[0].mxu0
    %v228 = vpop.f32.mrb[0].mxu0
    %v229 = vpop.f32.mrb[0].mxu0
    %230 = vdwg.mxu0
    %v231 = vtanh.pop %v226
    %v232 = vpack.c.bf16 %v231, %v231
    %v233 = vld [vmem:[%s4] sm:$0xff]
    %v234 = vld [vmem:[%s4 + $0x8] sm:$0xff]
    %v235 = vld [vmem:[%s4 + $0x10] sm:$0xff]
    %v236 = vld [vmem:[%s4 + $0x18] sm:$0xff]
    %v237 = vld [vmem:[%s4 + $0x20] sm:$0xff]
    %v238 = vld [vmem:[%s4 + $0x28] sm:$0xff]
    %v239 = vld [vmem:[%s4 + $0x30] sm:$0xff]
    %v240 = vld [vmem:[%s4 + $0x38] sm:$0xff]
    %v241 = vld [vmem:[%s5] sm:$0x3]
    %v243 = vlaneseq
    %v244 = vshrl.u32 %v243, 7
    %v245 = vsub.s32 0, %v244
    %v246 = vrot.slane %v241, %v245
    %v247 = vlaneseq
    %v248 = vshrl.u32 %v247, 7
    %v249 = vsub.s32 1, %v248
    %v250 = vrot.slane %v241, %v249
    %v261 = vunpack.c.l.b16 %v233
    %v262 = vunpack.c.h.b16 %v233
    %v263 = vunpack.c.l.b16 %v234
    %v264 = vunpack.c.h.b16 %v234
    %v265 = vunpack.c.l.b16 %v235
    %v266 = vunpack.c.h.b16 %v235
    %v267 = vunpack.c.l.b16 %v236
    %v268 = vunpack.c.h.b16 %v236
    %v269 = vunpack.c.l.b16 %v237
    %v270 = vunpack.c.h.b16 %v237
    %v271 = vunpack.c.l.b16 %v238
    %v272 = vunpack.c.h.b16 %v238
    %v273 = vunpack.c.l.b16 %v239
    %v274 = vunpack.c.h.b16 %v239
    %v275 = vunpack.c.l.b16 %v240
    %v276 = vunpack.c.h.b16 %v240
    %v277 = vpack.c.b16 %v263, %v261
    %v278 = vpack.c.b16 %v264, %v262
    %v279 = vpack.c.b16 %v267, %v265
    %v280 = vpack.c.b16 %v268, %v266
    %v281 = vpack.c.b16 %v271, %v269
    %v282 = vpack.c.b16 %v272, %v270
    %v283 = vpack.c.b16 %v275, %v273
    %v284 = vpack.c.b16 %v276, %v274
    %vm293 = vcmask 523264
    %v295 = vsel %vm293, %v232, 0
    %297 = vmatprep.subr.bf16.mxu0 %v278
    %298 = vmatpush1.bf16.msra.mxu0 %v277
    %299 = vmatprep.subr.bf16.mxu0 %v280
    %300 = vmatpush1.bf16.msra.mxu0 %v279
    %301 = vmatprep.subr.bf16.mxu0 %v282
    %302 = vmatpush1.bf16.msra.mxu0 %v281
    %303 = vmatprep.subr.bf16.mxu0 %v284
    %304 = vmatpush1.bf16.msra.mxu0 %v283
    %305 = vmatprep.subr.bf16.mxu0 0
    %306 = vmatpush1.bf16.msra.mxu0 0
    %307 = vmatprep.subr.bf16.mxu0 0
    %308 = vmatpush1.bf16.msra.mxu0 0
    %309 = vmatprep.subr.bf16.mxu0 0
    %310 = vmatpush1.bf16.msra.mxu0 0
    %311 = vmatprep.subr.bf16.mxu0 0
    %312 = vmatpush1.bf16.msra.mxu0 0
    %313 = vmatprep.subr.bf16.mxu0 0
    %314 = vmatpush1.bf16.msra.mxu0 0
    %315 = vmatprep.subr.bf16.mxu0 0
    %316 = vmatpush1.bf16.msra.mxu0 0
    %317 = vmatprep.subr.bf16.mxu0 0
    %318 = vmatpush1.bf16.msra.mxu0 0
    %319 = vmatprep.subr.bf16.mxu0 0
    %320 = vmatpush1.bf16.msra.mxu0 0
    %321 = vmatprep.subr.bf16.mxu0 0
    %322 = vmatpush1.bf16.msra.mxu0 0
    %323 = vmatprep.subr.bf16.mxu0 0
    %324 = vmatpush1.bf16.msra.mxu0 0
    %325 = vmatprep.subr.bf16.mxu0 0
    %326 = vmatpush1.bf16.msra.mxu0 0
    %327 = vmatprep.subr.bf16.mxu0 0
    %328 = vmatpush1.bf16.msra.mxu0 0
    %329 = vmatprep.mubr.bf16.mxu0 0
    %330 = vmatmul.mubr.bf16.gmra.mrb[0].mxu0 %v295
    %v331 = vpop.f32.mrb[0].mxu0
    %v332 = vadd.f32 %v246, %v331
    %v333 = vpop.f32.mrb[0].mxu0
    %v334 = vadd.f32 %v250, %v333
    %v335 = vpop.f32.mrb[0].mxu0
    %v336 = vpop.f32.mrb[0].mxu0
    %337 = vdwg.mxu0
    %v338 = vtanh.pop %v332
    %v339 = vtanh.pop %v334
    %v340 = vld [vmem:[#allocation8] sm:$0xf]
    %v341 = vpack.c.bf16 %v338, %v338
    %v342 = vpack.c.bf16 %v339, %v339
    %v343 = vld [vmem:[%s7] sm:$0xf]
    %v344 = vld [vmem:[%s7 + $0x4] sm:$0xf]
    %v345 = vld [vmem:[%s7 + $0x8] sm:$0xf]
    %v346 = vld [vmem:[%s7 + $0xc] sm:$0xf]
    %v347 = vld [vmem:[%s7 + $0x10] sm:$0xf]
    %v348 = vld [vmem:[%s7 + $0x14] sm:$0xf]
    %v349 = vld [vmem:[%s7 + $0x18] sm:$0xf]
    %v350 = vld [vmem:[%s7 + $0x1c] sm:$0xf]
    %v351 = vld [vmem:[%s7 + $0x20] sm:$0xf]
    %v352 = vld [vmem:[%s7 + $0x24] sm:$0xf]
    %v353 = vld [vmem:[%s7 + $0x28] sm:$0xf]
    %v354 = vld [vmem:[%s7 + $0x2c] sm:$0xf]
    %v355 = vld [vmem:[%s7 + $0x30] sm:$0xf]
    %v356 = vld [vmem:[%s7 + $0x34] sm:$0xf]
    %v357 = vld [vmem:[%s7 + $0x38] sm:$0xf]
    %v358 = vld [vmem:[%s7 + $0x3c] sm:$0xf]
    %v359 = vld [vmem:[%s7 + $0x40] sm:$0xf]
    %v360 = vld [vmem:[%s7 + $0x44] sm:$0xf]
    %v361 = vld [vmem:[%s7 + $0x48] sm:$0xf]
    %v362 = vld [vmem:[%s7 + $0x4c] sm:$0xf]
    %v363 = vld [vmem:[%s7 + $0x50] sm:$0xf]
    %v364 = vld [vmem:[%s7 + $0x54] sm:$0xf]
    %v365 = vld [vmem:[%s7 + $0x58] sm:$0xf]
    %v366 = vld [vmem:[%s7 + $0x5c] sm:$0xf]
    %v367 = vld [vmem:[%s7 + $0x60] sm:$0xf]
    %v368 = vld [vmem:[%s7 + $0x64] sm:$0xf]
    %v369 = vld [vmem:[%s7 + $0x68] sm:$0xf]
    %v370 = vld [vmem:[%s7 + $0x6c] sm:$0xf]
    %v371 = vld [vmem:[%s7 + $0x70] sm:$0xf]
    %v372 = vld [vmem:[%s7 + $0x74] sm:$0xf]
    %v373 = vld [vmem:[%s7 + $0x78] sm:$0xf]
    %v374 = vld [vmem:[%s7 + $0x7c] sm:$0xf]
    %v407 = vunpack.c.l.b16 %v343
    %v408 = vunpack.c.l.b16 %v344
    %v409 = vunpack.c.l.b16 %v345
    %v410 = vunpack.c.l.b16 %v346
    %v411 = vunpack.c.l.b16 %v347
    %v412 = vunpack.c.l.b16 %v348
    %v413 = vunpack.c.l.b16 %v349
    %v414 = vunpack.c.l.b16 %v350
    %v415 = vunpack.c.l.b16 %v351
    %v416 = vunpack.c.l.b16 %v352
    %v417 = vunpack.c.l.b16 %v353
    %v418 = vunpack.c.l.b16 %v354
    %v419 = vunpack.c.l.b16 %v355
    %v420 = vunpack.c.l.b16 %v356
    %v421 = vunpack.c.l.b16 %v357
    %v422 = vunpack.c.l.b16 %v358
    %v423 = vunpack.c.l.b16 %v359
    %v424 = vunpack.c.l.b16 %v360
    %v425 = vunpack.c.l.b16 %v361
    %v426 = vunpack.c.l.b16 %v362
    %v427 = vunpack.c.l.b16 %v363
    %v428 = vunpack.c.l.b16 %v364
    %v429 = vunpack.c.l.b16 %v365
    %v430 = vunpack.c.l.b16 %v366
    %v431 = vunpack.c.l.b16 %v367
    %v432 = vunpack.c.l.b16 %v368
    %v433 = vunpack.c.l.b16 %v369
    %v434 = vunpack.c.l.b16 %v370
    %v435 = vunpack.c.l.b16 %v371
    %v436 = vunpack.c.l.b16 %v372
    %v437 = vunpack.c.l.b16 %v373
    %v438 = vunpack.c.l.b16 %v374
    %v439 = vpack.c.b16 %v408, %v407
    %v440 = vpack.c.b16 %v410, %v409
    %v441 = vpack.c.b16 %v412, %v411
    %v442 = vpack.c.b16 %v414, %v413
    %v443 = vpack.c.b16 %v416, %v415
    %v444 = vpack.c.b16 %v418, %v417
    %v445 = vpack.c.b16 %v420, %v419
    %v446 = vpack.c.b16 %v422, %v421
    %v447 = vpack.c.b16 %v424, %v423
    %v448 = vpack.c.b16 %v426, %v425
    %v449 = vpack.c.b16 %v428, %v427
    %v450 = vpack.c.b16 %v430, %v429
    %v451 = vpack.c.b16 %v432, %v431
    %v452 = vpack.c.b16 %v434, %v433
    %v453 = vpack.c.b16 %v436, %v435
    %v454 = vpack.c.b16 %v438, %v437
    %471 = vmatprep.subr.bf16.mxu0 0
    %472 = vmatpush1.bf16.msra.mxu0 %v439
    %473 = vmatprep.subr.bf16.mxu0 0
    %474 = vmatpush1.bf16.msra.mxu0 %v440
    %475 = vmatprep.subr.bf16.mxu0 0
    %476 = vmatpush1.bf16.msra.mxu0 %v441
    %477 = vmatprep.subr.bf16.mxu0 0
    %478 = vmatpush1.bf16.msra.mxu0 %v442
    %479 = vmatprep.subr.bf16.mxu0 0
    %480 = vmatpush1.bf16.msra.mxu0 %v443
    %481 = vmatprep.subr.bf16.mxu0 0
    %482 = vmatpush1.bf16.msra.mxu0 %v444
    %483 = vmatprep.subr.bf16.mxu0 0
    %484 = vmatpush1.bf16.msra.mxu0 %v445
    %485 = vmatprep.subr.bf16.mxu0 0
    %486 = vmatpush1.bf16.msra.mxu0 %v446
    %487 = vmatprep.subr.bf16.mxu0 0
    %488 = vmatpush1.bf16.msra.mxu0 %v447
    %489 = vmatprep.subr.bf16.mxu0 0
    %490 = vmatpush1.bf16.msra.mxu0 %v448
    %491 = vmatprep.subr.bf16.mxu0 0
    %492 = vmatpush1.bf16.msra.mxu0 %v449
    %493 = vmatprep.subr.bf16.mxu0 0
    %494 = vmatpush1.bf16.msra.mxu0 %v450
    %495 = vmatprep.subr.bf16.mxu0 0
    %496 = vmatpush1.bf16.msra.mxu0 %v451
    %497 = vmatprep.subr.bf16.mxu0 0
    %498 = vmatpush1.bf16.msra.mxu0 %v452
    %499 = vmatprep.subr.bf16.mxu0 0
    %500 = vmatpush1.bf16.msra.mxu0 %v453
    %501 = vmatprep.subr.bf16.mxu0 0
    %502 = vmatpush1.bf16.msra.mxu0 %v454
    %503 = vmatprep.mubr.bf16.mxu0 %v342
    %504 = vmatmul.mubr.bf16.gmra.mrb[0].mxu0 %v341
    %v505 = vpop.f32.mrb[0].mxu0
    %v506 = vadd.f32 0.0, %v505
    %v507 = vpop.f32.mrb[0].mxu0
    %v508 = vpop.f32.mrb[0].mxu0
    %v509 = vpop.f32.mrb[0].mxu0
    %510 = vdwg.mxu0
    %vm511 = vcmask 64512
    %v513 = vsel %vm511, %v119, 0
    %vm515 = vcmask 1043456
    %v517 = vsel %vm515, %v340, 0
    %519 = vmatprep.subr.bf16.mxu0 0
    %520 = vmatpush1.bf16.msra.mxu0 %v517
    %521 = vmatprep.subr.bf16.mxu0 0
    %522 = vmatpush1.bf16.msra.mxu0 0
    %523 = vmatprep.subr.bf16.mxu0 0
    %524 = vmatpush1.bf16.msra.mxu0 0
    %525 = vmatprep.subr.bf16.mxu0 0
    %526 = vmatpush1.bf16.msra.mxu0 0
    %527 = vmatprep.subr.bf16.mxu0 0
    %528 = vmatpush1.bf16.msra.mxu0 0
    %529 = vmatprep.subr.bf16.mxu0 0
    %530 = vmatpush1.bf16.msra.mxu0 0
    %531 = vmatprep.subr.bf16.mxu0 0
    %532 = vmatpush1.bf16.msra.mxu0 0
    %533 = vmatprep.subr.bf16.mxu0 0
    %534 = vmatpush1.bf16.msra.mxu0 0
    %535 = vmatprep.subr.bf16.mxu0 0
    %536 = vmatpush1.bf16.msra.mxu0 0
    %537 = vmatprep.subr.bf16.mxu0 0
    %538 = vmatpush1.bf16.msra.mxu0 0
    %539 = vmatprep.subr.bf16.mxu0 0
    %540 = vmatpush1.bf16.msra.mxu0 0
    %541 = vmatprep.subr.bf16.mxu0 0
    %542 = vmatpush1.bf16.msra.mxu0 0
    %543 = vmatprep.subr.bf16.mxu0 0
    %544 = vmatpush1.bf16.msra.mxu0 0
    %545 = vmatprep.subr.bf16.mxu0 0
    %546 = vmatpush1.bf16.msra.mxu0 0
    %547 = vmatprep.subr.bf16.mxu0 0
    %548 = vmatpush1.bf16.msra.mxu0 0
    %549 = vmatprep.subr.bf16.mxu0 0
    %550 = vmatpush1.bf16.msra.mxu0 0
    %551 = vmatprep.mubr.bf16.mxu0 0
    %552 = vmatmul.mubr.bf16.gmra.mrb[0].mxu0 %v513
    %v553 = vpop.f32.mrb[0].mxu0
    %v554 = vadd.f32 %v506, %v553
    %v555 = vpop.f32.mrb[0].mxu0
    %v556 = vpop.f32.mrb[0].mxu0
    %v557 = vpop.f32.mrb[0].mxu0
    %558 = vdwg.mxu0
    %v559 = vld [vmem:[#allocation10] sm:$0x1]
    %v561 = vlaneseq
    %v562 = vshrl.u32 %v561, 7
    %v563 = vsub.s32 0, %v562
    %v564 = vrot.slane %v559, %v563
    %v566 = vadd.f32 %v554, %v564
    %v567 = vtanh.pop %v566
    %v568 = vpack.c.bf16 %v567, %v567
    %v569 = vld [vmem:[%s9] sm:$0xf]
    %v570 = vld [vmem:[%s9 + $0x4] sm:$0xf]
    %v571 = vld [vmem:[%s9 + $0x8] sm:$0xf]
    %v572 = vld [vmem:[%s9 + $0xc] sm:$0xf]
    %v573 = vld [vmem:[%s9 + $0x10] sm:$0xf]
    %v574 = vld [vmem:[%s9 + $0x14] sm:$0xf]
    %v575 = vld [vmem:[%s9 + $0x18] sm:$0xf]
    %v576 = vld [vmem:[%s9 + $0x1c] sm:$0xf]
    %v577 = vld [vmem:[%s9 + $0x20] sm:$0xf]
    %v578 = vld [vmem:[%s9 + $0x24] sm:$0xf]
    %v579 = vld [vmem:[%s9 + $0x28] sm:$0xf]
    %v580 = vld [vmem:[%s9 + $0x2c] sm:$0xf]
    %v581 = vld [vmem:[%s9 + $0x30] sm:$0xf]
    %v582 = vld [vmem:[%s9 + $0x34] sm:$0xf]
    %v583 = vld [vmem:[%s9 + $0x38] sm:$0xf]
    %v584 = vld [vmem:[%s9 + $0x3c] sm:$0xf]
    %v585 = vld [vmem:[%s10] sm:$0x1]
    %v587 = vlaneseq
    %v588 = vshrl.u32 %v587, 7
    %v589 = vsub.s32 0, %v588
    %v590 = vrot.slane %v585, %v589
    %v608 = vunpack.c.l.b16 %v569
    %v609 = vunpack.c.l.b16 %v570
    %v610 = vunpack.c.l.b16 %v571
    %v611 = vunpack.c.l.b16 %v572
    %v612 = vunpack.c.l.b16 %v573
    %v613 = vunpack.c.l.b16 %v574
    %v614 = vunpack.c.l.b16 %v575
    %v615 = vunpack.c.l.b16 %v576
    %v616 = vunpack.c.l.b16 %v577
    %v617 = vunpack.c.l.b16 %v578
    %v618 = vunpack.c.l.b16 %v579
    %v619 = vunpack.c.l.b16 %v580
    %v620 = vunpack.c.l.b16 %v581
    %v621 = vunpack.c.l.b16 %v582
    %v622 = vunpack.c.l.b16 %v583
    %v623 = vunpack.c.l.b16 %v584
    %v624 = vpack.c.b16 %v609, %v608
    %v625 = vpack.c.b16 %v611, %v610
    %v626 = vpack.c.b16 %v613, %v612
    %v627 = vpack.c.b16 %v615, %v614
    %v628 = vpack.c.b16 %v617, %v616
    %v629 = vpack.c.b16 %v619, %v618
    %v630 = vpack.c.b16 %v621, %v620
    %v631 = vpack.c.b16 %v623, %v622
    %640 = vmatprep.subr.bf16.mxu0 0
    %641 = vmatpush1.bf16.msra.mxu0 %v624
    %642 = vmatprep.subr.bf16.mxu0 0
    %643 = vmatpush1.bf16.msra.mxu0 %v625
    %644 = vmatprep.subr.bf16.mxu0 0
    %645 = vmatpush1.bf16.msra.mxu0 %v626
    %646 = vmatprep.subr.bf16.mxu0 0
    %647 = vmatpush1.bf16.msra.mxu0 %v627
    %648 = vmatprep.subr.bf16.mxu0 0
    %649 = vmatpush1.bf16.msra.mxu0 %v628
    %650 = vmatprep.subr.bf16.mxu0 0
    %651 = vmatpush1.bf16.msra.mxu0 %v629
    %652 = vmatprep.subr.bf16.mxu0 0
    %653 = vmatpush1.bf16.msra.mxu0 %v630
    %654 = vmatprep.subr.bf16.mxu0 0
    %655 = vmatpush1.bf16.msra.mxu0 %v631
    %656 = vmatprep.subr.bf16.mxu0 0
    %657 = vmatpush1.bf16.msra.mxu0 0
    %658 = vmatprep.subr.bf16.mxu0 0
    %659 = vmatpush1.bf16.msra.mxu0 0
    %660 = vmatprep.subr.bf16.mxu0 0
    %661 = vmatpush1.bf16.msra.mxu0 0
    %662 = vmatprep.subr.bf16.mxu0 0
    %663 = vmatpush1.bf16.msra.mxu0 0
    %664 = vmatprep.subr.bf16.mxu0 0
    %665 = vmatpush1.bf16.msra.mxu0 0
    %666 = vmatprep.subr.bf16.mxu0 0
    %667 = vmatpush1.bf16.msra.mxu0 0
    %668 = vmatprep.subr.bf16.mxu0 0
    %669 = vmatpush1.bf16.msra.mxu0 0
    %670 = vmatprep.subr.bf16.mxu0 0
    %671 = vmatpush1.bf16.msra.mxu0 0
    %672 = vmatprep.mubr.bf16.mxu0 0
    %673 = vmatmul.mubr.bf16.gmra.mrb[0].mxu0 %v568
    %v674 = vpop.f32.mrb[0].mxu0
    %v675 = vadd.f32 %v590, %v674
    %v676 = vpop.f32.mrb[0].mxu0
    %v677 = vpop.f32.mrb[0].mxu0
    %v678 = vpop.f32.mrb[0].mxu0
    %679 = vdwg.mxu0
    %v680 = vtanh.pop %v675
    %v681 = vpack.c.bf16 %v680, %v680
    %v682 = vld [vmem:[#allocation11] sm:$0xf]
    %v683 = vld [vmem:[#allocation11 + $0x4] sm:$0xf]
    %v684 = vld [vmem:[#allocation11 + $0x8] sm:$0xf]
    %v685 = vld [vmem:[#allocation11 + $0xc] sm:$0xf]
    %v686 = vld [vmem:[%s12] sm:$0x1]
    %v688 = vlaneseq
    %v689 = vshrl.u32 %v688, 7
    %v690 = vsub.s32 0, %v689
    %v691 = vrot.slane %v686, %v690
    %v697 = vunpack.c.l.b16 %v682
    %v698 = vunpack.c.l.b16 %v683
    %v699 = vunpack.c.l.b16 %v684
    %v700 = vunpack.c.l.b16 %v685
    %v701 = vpack.c.b16 %v698, %v697
    %v702 = vpack.c.b16 %v700, %v699
    %vm705 = vcmask 261120
    %v707 = vsel %vm705, %v681, 0
    %709 = vmatprep.subr.bf16.mxu0 0
    %710 = vmatpush1.bf16.msra.mxu0 %v701
    %711 = vmatprep.subr.bf16.mxu0 0
    %712 = vmatpush1.bf16.msra.mxu0 %v702
    %713 = vmatprep.subr.bf16.mxu0 0
    %714 = vmatpush1.bf16.msra.mxu0 0
    %715 = vmatprep.subr.bf16.mxu0 0
    %716 = vmatpush1.bf16.msra.mxu0 0
    %717 = vmatprep.subr.bf16.mxu0 0
    %718 = vmatpush1.bf16.msra.mxu0 0
    %719 = vmatprep.subr.bf16.mxu0 0
    %720 = vmatpush1.bf16.msra.mxu0 0
    %721 = vmatprep.subr.bf16.mxu0 0
    %722 = vmatpush1.bf16.msra.mxu0 0
    %723 = vmatprep.subr.bf16.mxu0 0
    %724 = vmatpush1.bf16.msra.mxu0 0
    %725 = vmatprep.subr.bf16.mxu0 0
    %726 = vmatpush1.bf16.msra.mxu0 0
    %727 = vmatprep.subr.bf16.mxu0 0
    %728 = vmatpush1.bf16.msra.mxu0 0
    %729 = vmatprep.subr.bf16.mxu0 0
    %730 = vmatpush1.bf16.msra.mxu0 0
    %731 = vmatprep.subr.bf16.mxu0 0
    %732 = vmatpush1.bf16.msra.mxu0 0
    %733 = vmatprep.subr.bf16.mxu0 0
    %734 = vmatpush1.bf16.msra.mxu0 0
    %735 = vmatprep.subr.bf16.mxu0 0
    %736 = vmatpush1.bf16.msra.mxu0 0
    %737 = vmatprep.subr.bf16.mxu0 0
    %738 = vmatpush1.bf16.msra.mxu0 0
    %739 = vmatprep.subr.bf16.mxu0 0
    %740 = vmatpush1.bf16.msra.mxu0 0
    %741 = vmatprep.mubr.bf16.mxu0 0
    %742 = vmatmul.mubr.bf16.gmra.mrb[0].mxu0 %v707
    %v743 = vpop.f32.mrb[0].mxu0
    %v744 = vadd.f32 %v691, %v743
    %v745 = vpop.f32.mrb[0].mxu0
    %v746 = vpop.f32.mrb[0].mxu0
    %v747 = vpop.f32.mrb[0].mxu0
    %748 = vdwg.mxu0
    %749 = vst [vmem:[#allocation13] sm:$0xff] %v744
    // Predicated region
    $region78: #{tpu_custom_call.1} parent=1 // pred_check
      _
    $region79: #{tpu_custom_call.1} parent=1 // pred_check_branch
      %751 = sbr.rel (0) target = $region81
    $region80: #{tpu_custom_call.1} parent=1 // pred_region
      %s753 = ssub.s32 128, 128
      %754 = vsyncadd [#allocation4], %s753
      %s756 = sshll.u32 [#allocation13], 4
      %s757 = int_to_ptr.vmem [resolvable:$true] %s756
      %759 = dma.vmem_to_hbm [thread:$0]  %s757, 128, %s13, [#allocation4]
    $region81: #{tpu_custom_call.1} parent=1 // pred_fallthru
      _
    // Predicated region
    $region82: #{tpu_custom_call.1} parent=1 // pred_check
      _
    $region83: #{tpu_custom_call.1} parent=1 // pred_check_branch
      %761 = sbr.rel (0) target = $region85
    $region84: #{tpu_custom_call.1} parent=1 // pred_region
      %762 = dma.done [#allocation4], 128
    $region85: #{tpu_custom_call.1} parent=1 // pred_fallthru
      _
    %763 = vsyncpa [#allocation3], 1
    %764 = vsyncpa [#allocation6], 1
    %765 = vsyncpa [#allocation9], 1
    %766 = vsyncpa [#allocation12], 1
    %767 = vsyncpa [#allocation4], 1

</llo_original>
